<compile_context>
chip_gen: v7x
topology: tpu7x:2x2x1
jax: 0.10.0
libtpu: 0.0.40
codegen_flags: <defaults>
</compile_context>

<pallas_src>
import jax
import jax.numpy as jnp
from jax.experimental import pallas as pl
from jax.experimental.pallas import tpu as pltpu


def _round_up(x, m):
    return ((x + m - 1) // m) * m


# ----------------------------- Pallas kernel --------------------------------
def _disc_mlp_kernel(x_ref, w1_ref, w23_ref, aux_ref, b4_ref, out_ref):
    dim = w1_ref.shape[1]

    aux = aux_ref[...]                       # (4, DIM) f32: b1 | b2 | b3 | w4_row
    b1 = aux[0:1, :]
    b2 = aux[1:2, :]
    b3 = aux[2:3, :]
    w4 = aux[3:4, :]

    w23 = w23_ref[...]                       # (2*DIM, DIM) bf16: [w2 ; w3]

    x = x_ref[...]                           # (TILE_B, INPUT_DIM) bf16
    h = jnp.dot(x, w1_ref[...], preferred_element_type=jnp.float32) + b1
    h = jnp.maximum(h, 0.0)                  # ReLU(True), f32

    h = jnp.dot(h.astype(jnp.bfloat16), w23[:dim, :],
                preferred_element_type=jnp.float32) + b2
    h = jnp.maximum(h, 0.0)

    h = jnp.dot(h.astype(jnp.bfloat16), w23[dim:, :],
                preferred_element_type=jnp.float32) + b3
    h = jnp.maximum(h, 0.0)

    # Final (DIM -> 1) layer: VPU multiply + lane reduce (no N=1 MXU pass),
    # written lane-dense as a (1, TILE_B) row.
    o = jnp.sum(h * w4, axis=-1) + b4_ref[0]          # (TILE_B,) f32
    out_ref[...] = o[None, :].astype(out_ref.dtype)   # (1, TILE_B)


def discriminator_sn_time_forward(x, params, batch_size, input_dim, *, tile_b=256):
    """Pallas forward of DiscriminatorSNTime.

    x: any shape with batch_size * input_dim elements (mirrors inputs.view(B, D)).
    params: packed dict from init_params (w1..w3 pre-spectral-normalized).
    Returns a (batch_size,) float32 vector (mirrors output.view(-1)).
    """
    dim = params["w1"].shape[1]

    # Batch tile: multiple of 128, no larger than the (rounded-up) batch.
    tile_b = max(128, min(_round_up(tile_b, 128), _round_up(batch_size, 128)))
    b_pad = _round_up(batch_size, tile_b)
    num_tiles = b_pad // tile_b

    x2d = jnp.reshape(x, (batch_size, input_dim)).astype(jnp.bfloat16)
    if b_pad != batch_size:
        x2d = jnp.pad(x2d, ((0, b_pad - batch_size), (0, 0)))

    flops = 2 * batch_size * (input_dim * dim + 2 * dim * dim + dim)
    bytes_accessed = (x2d.size * 2                    # bf16 activations
                      + params["w1"].size * 2
                      + params["w23"].size * 2
                      + params["aux"].size * 4
                      + 4                             # b4 scalar
                      + b_pad * 4)                    # f32 output

    out = pl.pallas_call(
        _disc_mlp_kernel,
        out_shape=jax.ShapeDtypeStruct((1, b_pad), jnp.float32),
        grid=(num_tiles,),
        in_specs=[
            pl.BlockSpec((tile_b, input_dim), lambda i: (i, 0)),        # x tile
            pl.BlockSpec((input_dim, dim), lambda i: (0, 0)),           # w1 (resident)
            pl.BlockSpec((2 * dim, dim), lambda i: (0, 0)),             # w2|w3 (resident)
            pl.BlockSpec((4, dim), lambda i: (0, 0)),                   # b1,b2,b3,w4 (resident)
            pl.BlockSpec(memory_space=pltpu.MemorySpace.SMEM),          # b4 scalar
        ],
        out_specs=pl.BlockSpec((1, tile_b), lambda i: (0, i)),          # lane-dense row
        compiler_params=pltpu.CompilerParams(
            dimension_semantics=("parallel",)),
        cost_estimate=pl.CostEstimate(flops=flops, transcendentals=0,
                                      bytes_accessed=bytes_accessed),
    )(x2d, params["w1"], params["w23"], params["aux"], params["b4"])

    return jnp.reshape(out, (-1,))[:batch_size]


# ------------------------------ parameter glue -------------------------------
def _spectral_normalize(w_out_in, key, n_power_iterations=1, eps=1e-12):
    """torch.nn.utils.spectral_norm forward semantics: W / sigma via power iteration.
    w_out_in has PyTorch Linear layout (out_features, in_features).
    NOTE: torch persists u across calls; here it is synthetic parameter setup."""
    u = jax.random.normal(key, (w_out_in.shape[0],), dtype=jnp.float32)
    u = u / (jnp.linalg.norm(u) + eps)
    v = None
    for _ in range(n_power_iterations):
        v = w_out_in.T @ u
        v = v / (jnp.linalg.norm(v) + eps)
        u = w_out_in @ v
        u = u / (jnp.linalg.norm(u) + eps)
    sigma = u @ (w_out_in @ v)
    return w_out_in / sigma


def init_params(key, dim, input_dim):
    """Deterministic synthetic init (layer shapes follow the module's __init__),
    packed for the kernel:
      w1  : (INPUT_DIM, DIM)   bf16
      w23 : (2*DIM, DIM)       bf16  -- [w2 ; w3] stacked along sublanes
      aux : (4, DIM)           f32   -- rows: b1, b2, b3, w4_row
      b4  : (1,)               f32   -- final-layer bias (SMEM scalar)
    """
    ks = jax.random.split(key, 12)

    def linear(kw, kb, fan_in, fan_out):
        bound = 1.0 / jnp.sqrt(fan_in)
        w = jax.random.uniform(kw, (fan_out, fan_in), jnp.float32, -bound, bound)
        b = jax.random.uniform(kb, (fan_out,), jnp.float32, -bound, bound)
        return w, b

    w1, b1 = linear(ks[0], ks[1], input_dim, dim)
    w2, b2 = linear(ks[2], ks[3], dim, dim)
    w3, b3 = linear(ks[4], ks[5], dim, dim)
    w4, b4 = linear(ks[6], ks[7], dim, 1)

    # spectral_norm wraps the first three Linear layers only.
    w1 = _spectral_normalize(w1, ks[8])
    w2 = _spectral_normalize(w2, ks[9])
    w3 = _spectral_normalize(w3, ks[10])

    # Transpose to (in, out) for the kernel and pack.
    w1_t, w2_t, w3_t, w4_t = w1.T, w2.T, w3.T, w4.T          # w4_t: (DIM, 1)
    return {
        "w1": w1_t.astype(jnp.bfloat16),
        "w23": jnp.concatenate([w2_t, w3_t], axis=0).astype(jnp.bfloat16),
        "aux": jnp.stack([b1, b2, b3, w4_t[:, 0]], axis=0).astype(jnp.float32),
        "b4": b4.astype(jnp.float32),                         # (1,)
    }


# --------------------------------- reference ---------------------------------
def _reference_forward(x, params, batch_size, input_dim):
    """Plain-JAX reference with the same numerics model (bf16 MXU operands,
    f32 accumulation / bias / ReLU)."""
    dim = params["w1"].shape[1]
    w1 = params["w1"]
    w23 = params["w23"]
    w2, w3 = w23[:dim, :], w23[dim:, :]
    aux = params["aux"]
    b1, b2, b3, w4 = aux[0:1, :], aux[1:2, :], aux[2:3, :], aux[3:4, :]
    b4 = params["b4"][0]

    h = jnp.reshape(x, (batch_size, input_dim)).astype(jnp.bfloat16)
    h = jnp.maximum(jnp.dot(h, w1, preferred_element_type=jnp.float32) + b1, 0.0)
    h = jnp.maximum(jnp.dot(h.astype(jnp.bfloat16), w2,
                            preferred_element_type=jnp.float32) + b2, 0.0)
    h = jnp.maximum(jnp.dot(h.astype(jnp.bfloat16), w3,
                            preferred_element_type=jnp.float32) + b3, 0.0)
    o = jnp.sum(h * w4, axis=-1) + b4
    return o


if __name__ == "__main__":
    DIM, INPUT_DIM, BATCH_SIZE = 64, 32, 8

    key = jax.random.PRNGKey(0)
    k_params, k_x = jax.random.split(key)

    params = init_params(k_params, DIM, INPUT_DIM)
    x = jax.random.normal(k_x, (BATCH_SIZE, INPUT_DIM), dtype=jnp.float32)

    out = discriminator_sn_time_forward(x, params, BATCH_SIZE, INPUT_DIM)
    out = jax.block_until_ready(out)

    ref = _reference_forward(x, params, BATCH_SIZE, INPUT_DIM)
    assert out.shape == (BATCH_SIZE,)
    assert jnp.allclose(out, ref, atol=1e-3, rtol=1e-3), (out, ref)

    print("KERNEL_OK")
</pallas_src>

<mosaic_0001>
module attributes {stable_mosaic.version = 11 : i64} {
  func.func @_disc_mlp_kernel(%arg0: i32, %arg1: memref<128x32xbf16, #tpu.memory_space<vmem>>, %arg2: memref<32x64xbf16, #tpu.memory_space<vmem>>, %arg3: memref<128x64xbf16, #tpu.memory_space<vmem>>, %arg4: memref<4x64xf32, #tpu.memory_space<vmem>>, %arg5: memref<1xf32, #tpu.memory_space<smem>>, %arg6: memref<1x128xf32, #tpu.memory_space<vmem>>) attributes {dimension_semantics = [#tpu.dimension_semantics<parallel>], iteration_bounds = array<i64: 1>, scalar_prefetch = 0 : i64, scratch_operands = 0 : i64, tpu.core_type = #tpu.core_type<tc>, window_params = [{transform_indices = @transform_0, window_bounds = array<i64: 128, 32>}, {pipeline_mode = #tpu.pipeline_mode<synchronous>, transform_indices = @transform_1, window_bounds = array<i64: 32, 64>}, {pipeline_mode = #tpu.pipeline_mode<synchronous>, transform_indices = @transform_2, window_bounds = array<i64: 128, 64>}, {pipeline_mode = #tpu.pipeline_mode<synchronous>, transform_indices = @transform_3, window_bounds = array<i64: 4, 64>}, {transform_indices = @transform_4, window_bounds = array<i64: 1>}, {transform_indices = @transform_5, window_bounds = array<i64: 1, 128>}]} {
    %c0 = arith.constant 0 : index
    %c0_0 = arith.constant 0 : index
    %0 = vector.load %arg4[%c0, %c0_0] : memref<4x64xf32, #tpu.memory_space<vmem>>, vector<4x64xf32>
    %1 = vector.extract_strided_slice %0 {offsets = [0, 0], sizes = [1, 64], strides = [1, 1]} : vector<4x64xf32> to vector<1x64xf32>
    %2 = vector.extract_strided_slice %0 {offsets = [1, 0], sizes = [1, 64], strides = [1, 1]} : vector<4x64xf32> to vector<1x64xf32>
    %3 = vector.extract_strided_slice %0 {offsets = [2, 0], sizes = [1, 64], strides = [1, 1]} : vector<4x64xf32> to vector<1x64xf32>
    %4 = vector.extract_strided_slice %0 {offsets = [3, 0], sizes = [1, 64], strides = [1, 1]} : vector<4x64xf32> to vector<1x64xf32>
    %c0_1 = arith.constant 0 : index
    %c0_2 = arith.constant 0 : index
    %5 = vector.load %arg3[%c0_1, %c0_2] : memref<128x64xbf16, #tpu.memory_space<vmem>>, vector<128x64xbf16>
    %c0_3 = arith.constant 0 : index
    %c0_4 = arith.constant 0 : index
    %6 = vector.load %arg1[%c0_3, %c0_4] : memref<128x32xbf16, #tpu.memory_space<vmem>>, vector<128x32xbf16>
    %c0_5 = arith.constant 0 : index
    %c0_6 = arith.constant 0 : index
    %7 = vector.load %arg2[%c0_5, %c0_6] : memref<32x64xbf16, #tpu.memory_space<vmem>>, vector<32x64xbf16>
    %cst = arith.constant dense<0.000000e+00> : vector<128x64xf32>
    %8 = tpu.matmul %6, %7, %cst {dimension_numbers = #tpu.dot_dimension_numbers<[1], [0], [0], [1], [0, 0, 1, 1], [], []>} : vector<128x32xbf16>, vector<32x64xbf16>, vector<128x64xf32> -> vector<128x64xf32>
    %9 = vector.broadcast %1 : vector<1x64xf32> to vector<128x64xf32>
    %10 = arith.addf %8, %9 : vector<128x64xf32>
    %cst_7 = arith.constant 0.000000e+00 : f32
    %11 = vector.broadcast %cst_7 : f32 to vector<128x64xf32>
    %12 = arith.maximumf %10, %11 : vector<128x64xf32>
    %13 = arith.truncf %12 : vector<128x64xf32> to vector<128x64xbf16>
    %14 = vector.extract_strided_slice %5 {offsets = [0, 0], sizes = [64, 64], strides = [1, 1]} : vector<128x64xbf16> to vector<64x64xbf16>
    %cst_8 = arith.constant dense<0.000000e+00> : vector<128x64xf32>
    %15 = tpu.matmul %13, %14, %cst_8 {dimension_numbers = #tpu.dot_dimension_numbers<[1], [0], [0], [1], [0, 0, 1, 1], [], []>} : vector<128x64xbf16>, vector<64x64xbf16>, vector<128x64xf32> -> vector<128x64xf32>
    %16 = vector.broadcast %2 : vector<1x64xf32> to vector<128x64xf32>
    %17 = arith.addf %15, %16 : vector<128x64xf32>
    %cst_9 = arith.constant 0.000000e+00 : f32
    %18 = vector.broadcast %cst_9 : f32 to vector<128x64xf32>
    %19 = arith.maximumf %17, %18 : vector<128x64xf32>
    %20 = arith.truncf %19 : vector<128x64xf32> to vector<128x64xbf16>
    %21 = vector.extract_strided_slice %5 {offsets = [64, 0], sizes = [64, 64], strides = [1, 1]} : vector<128x64xbf16> to vector<64x64xbf16>
    %cst_10 = arith.constant dense<0.000000e+00> : vector<128x64xf32>
    %22 = tpu.matmul %20, %21, %cst_10 {dimension_numbers = #tpu.dot_dimension_numbers<[1], [0], [0], [1], [0, 0, 1, 1], [], []>} : vector<128x64xbf16>, vector<64x64xbf16>, vector<128x64xf32> -> vector<128x64xf32>
    %23 = vector.broadcast %3 : vector<1x64xf32> to vector<128x64xf32>
    %24 = arith.addf %22, %23 : vector<128x64xf32>
    %cst_11 = arith.constant 0.000000e+00 : f32
    %25 = vector.broadcast %cst_11 : f32 to vector<128x64xf32>
    %26 = arith.maximumf %24, %25 : vector<128x64xf32>
    %27 = vector.broadcast %4 : vector<1x64xf32> to vector<128x64xf32>
    %28 = arith.mulf %26, %27 : vector<128x64xf32>
    %cst_12 = arith.constant dense<0.000000e+00> : vector<128xf32>
    %29 = vector.multi_reduction <add>, %28, %cst_12 [1] : vector<128x64xf32> to vector<128xf32>
    %c0_13 = arith.constant 0 : index
    %30 = memref.load %arg5[%c0_13] : memref<1xf32, #tpu.memory_space<smem>>
    %31 = vector.broadcast %30 : f32 to vector<128xf32>
    %32 = arith.addf %29, %31 : vector<128xf32>
    %33 = vector.shape_cast %32 : vector<128xf32> to vector<1x128xf32>
    %c0_14 = arith.constant 0 : index
    %c0_15 = arith.constant 0 : index
    %34 = vector.load %arg6[%c0_14, %c0_15] : memref<1x128xf32, #tpu.memory_space<vmem>>, vector<1x128xf32>
    tpu.vector_store %arg6[%c0_14, %c0_15], %33 {strides = array<i32>} : memref<1x128xf32, #tpu.memory_space<vmem>>, vector<1x128xf32>,
    return
  }
  func.func @transform_0(%arg0: i32) -> (i32, i32) {
    %c0_i32 = arith.constant 0 : i32
    %c0_i32_0 = arith.constant 0 : i32
    return %arg0, %c0_i32 : i32, i32
  }
  func.func @transform_1(%arg0: i32) -> (i32, i32) {
    %c0_i32 = arith.constant 0 : i32
    %c0_i32_0 = arith.constant 0 : i32
    %c0_i32_1 = arith.constant 0 : i32
    return %c0_i32, %c0_i32_0 : i32, i32
  }
  func.func @transform_2(%arg0: i32) -> (i32, i32) {
    %c0_i32 = arith.constant 0 : i32
    %c0_i32_0 = arith.constant 0 : i32
    %c0_i32_1 = arith.constant 0 : i32
    return %c0_i32, %c0_i32_0 : i32, i32
  }
  func.func @transform_3(%arg0: i32) -> (i32, i32) {
    %c0_i32 = arith.constant 0 : i32
    %c0_i32_0 = arith.constant 0 : i32
    %c0_i32_1 = arith.constant 0 : i32
    return %c0_i32, %c0_i32_0 : i32, i32
  }
  func.func @transform_4(%arg0: i32) -> i32 {
    %c0_i32 = arith.constant 0 : i32
    %c0_i32_0 = arith.constant 0 : i32
    return %c0_i32 : i32
  }
  func.func @transform_5(%arg0: i32) -> (i32, i32) {
    %c0_i32 = arith.constant 0 : i32
    %c0_i32_0 = arith.constant 0 : i32
    return %c0_i32, %arg0 : i32, i32
  }
}

</mosaic_0001>

<llo_original>
// kernel: tpu_custom_call.1
$region0: #{tpu_custom_call.1}
  #allocation0 [shape = 'u32[]', space=smem, size = 0x4, offset = 0x4, fixed_abs, tag = 'smem constant byte address 0x4 - core index']
  #allocation1 [shape = 'u32[144,128]{1,0:T(1,128)}', space=vmem, size = 0x12000, scoped, tag = 'internal scratch']
  #allocation2 [shape = 'f32[1]{0:T(128)S(6)}', space=smem, size = 0x200, scoped, tag = 'scoped memory for tpu_custom_call.1']
  %s0 = inlined_call_operand.vmem [shape: bf16[128,32], index: 0, kind: input, shape index: {}]
  %s1 = inlined_call_operand.vmem [shape: bf16[32,64], index: 1, kind: input, shape index: {}]
  %s2 = inlined_call_operand.vmem [shape: bf16[128,64], index: 2, kind: input, shape index: {}]
  %s3 = inlined_call_operand.vmem [shape: f32[4,64], index: 3, kind: input, shape index: {}]
  %s4 = inlined_call_operand.<no memory space> [shape: f32[1], index: 4, kind: input, shape index: {}]
  %s5 = inlined_call_operand.hbm [shape: f32[1,128], index: 5, kind: output, shape index: {}]
  %s6 = sld [smem:[#allocation0]]
  $region30: #{tpu_custom_call.1} parent=0
    _
  %s8 = ssub.s32 1, %s6
  %s9 = scalar_select 0, %s8, %s6
  %10 = sst [smem:[#allocation2]] %s4
  $region1: #{tpu_custom_call.1} parent=0
    #allocation3 [shape = 'u8[512]{0}', space=vmem, size = 0x400, scoped, tag = 'output window, operand 0, single buffered']
    #allocation4 [shape = 's32[1]{0}', space=sflag, size = 0x4, scoped, tag = 'scoped memory for tpu_custom_call.1']
    %11 = vsyncpa [#allocation4], 0
    // Predicated region
    $region2: #{tpu_custom_call.1} parent=1 // pred_check
      _
    $region3: #{tpu_custom_call.1} parent=1 // pred_check_branch
      %13 = sbr.rel (0) target = $region5
    $region4: #{tpu_custom_call.1} parent=1 // pred_region
      _
    $region5: #{tpu_custom_call.1} parent=1 // pred_fallthru
      _
    // Predicated region
    $region6: #{tpu_custom_call.1} parent=1 // pred_check
      _
    $region7: #{tpu_custom_call.1} parent=1 // pred_check_branch
      %15 = sbr.rel (0) target = $region9
    $region8: #{tpu_custom_call.1} parent=1 // pred_region
      _
    $region9: #{tpu_custom_call.1} parent=1 // pred_fallthru
      _
    // Predicated region
    $region10: #{tpu_custom_call.1} parent=1 // pred_check
      _
    $region11: #{tpu_custom_call.1} parent=1 // pred_check_branch
      %17 = sbr.rel (0) target = $region13
    $region12: #{tpu_custom_call.1} parent=1 // pred_region
      _
    $region13: #{tpu_custom_call.1} parent=1 // pred_fallthru
      _
    // Predicated region
    $region14: #{tpu_custom_call.1} parent=1 // pred_check
      _
    $region15: #{tpu_custom_call.1} parent=1 // pred_check_branch
      %19 = sbr.rel (0) target = $region17
    $region16: #{tpu_custom_call.1} parent=1 // pred_region
      _
    $region17: #{tpu_custom_call.1} parent=1 // pred_fallthru
      _
    // Predicated region
    $region18: #{tpu_custom_call.1} parent=1 // pred_check
      _
    $region19: #{tpu_custom_call.1} parent=1 // pred_check_branch
      %21 = sbr.rel (0) target = $region21
    $region20: #{tpu_custom_call.1} parent=1 // pred_region
      _
    $region21: #{tpu_custom_call.1} parent=1 // pred_fallthru
      _
    %v23 = vld [vmem:[%s3] sm:$0xf]
    %v24 = vld [vmem:[%s2] sm:$0xf]
    %v25 = vld [vmem:[%s2 + $0x4] sm:$0xf]
    %v26 = vld [vmem:[%s2 + $0x8] sm:$0xf]
    %v27 = vld [vmem:[%s2 + $0xc] sm:$0xf]
    %v28 = vld [vmem:[%s2 + $0x10] sm:$0xf]
    %v29 = vld [vmem:[%s2 + $0x14] sm:$0xf]
    %v30 = vld [vmem:[%s2 + $0x18] sm:$0xf]
    %v31 = vld [vmem:[%s2 + $0x1c] sm:$0xf]
    %v32 = vld [vmem:[%s2 + $0x20] sm:$0xf]
    %v33 = vld [vmem:[%s2 + $0x24] sm:$0xf]
    %v34 = vld [vmem:[%s2 + $0x28] sm:$0xf]
    %v35 = vld [vmem:[%s2 + $0x2c] sm:$0xf]
    %v36 = vld [vmem:[%s2 + $0x30] sm:$0xf]
    %v37 = vld [vmem:[%s2 + $0x34] sm:$0xf]
    %v38 = vld [vmem:[%s2 + $0x38] sm:$0xf]
    %v39 = vld [vmem:[%s2 + $0x3c] sm:$0xf]
    %v40 = vld [vmem:[%s0] sm:$0xf]
    %v41 = vld [vmem:[%s0 + $0x4] sm:$0xf]
    %v42 = vld [vmem:[%s0 + $0x8] sm:$0xf]
    %v43 = vld [vmem:[%s0 + $0xc] sm:$0xf]
    %v44 = vld [vmem:[%s0 + $0x10] sm:$0xf]
    %v45 = vld [vmem:[%s0 + $0x14] sm:$0xf]
    %v46 = vld [vmem:[%s0 + $0x18] sm:$0xf]
    %v47 = vld [vmem:[%s0 + $0x1c] sm:$0xf]
    %v48 = vld [vmem:[%s0 + $0x20] sm:$0xf]
    %v49 = vld [vmem:[%s0 + $0x24] sm:$0xf]
    %v50 = vld [vmem:[%s0 + $0x28] sm:$0xf]
    %v51 = vld [vmem:[%s0 + $0x2c] sm:$0xf]
    %v52 = vld [vmem:[%s0 + $0x30] sm:$0xf]
    %v53 = vld [vmem:[%s0 + $0x34] sm:$0xf]
    %v54 = vld [vmem:[%s0 + $0x38] sm:$0xf]
    %v55 = vld [vmem:[%s0 + $0x3c] sm:$0xf]
    %v56 = vld [vmem:[%s1] sm:$0xf]
    %v57 = vld [vmem:[%s1 + $0x4] sm:$0xf]
    %v58 = vld [vmem:[%s1 + $0x8] sm:$0xf]
    %v59 = vld [vmem:[%s1 + $0xc] sm:$0xf]
    %v60 = vlaneseq
    %v61 = vshrl.u32 %v60, 7
    %v62 = vsub.s32 0, %v61
    %v63 = vrot.slane %v23, %v62
    %v80 = vunpack.c.l.b16 %v40
    %v81 = vunpack.c.l.b16 %v41
    %v82 = vunpack.c.l.b16 %v42
    %v83 = vunpack.c.l.b16 %v43
    %v84 = vunpack.c.l.b16 %v44
    %v85 = vunpack.c.l.b16 %v45
    %v86 = vunpack.c.l.b16 %v46
    %v87 = vunpack.c.l.b16 %v47
    %v88 = vunpack.c.l.b16 %v48
    %v89 = vunpack.c.l.b16 %v49
    %v90 = vunpack.c.l.b16 %v50
    %v91 = vunpack.c.l.b16 %v51
    %v92 = vunpack.c.l.b16 %v52
    %v93 = vunpack.c.l.b16 %v53
    %v94 = vunpack.c.l.b16 %v54
    %v95 = vunpack.c.l.b16 %v55
    %v96 = vpack.c.b16 %v81, %v80
    %v97 = vpack.c.b16 %v83, %v82
    %v98 = vpack.c.b16 %v85, %v84
    %v99 = vpack.c.b16 %v87, %v86
    %v100 = vpack.c.b16 %v89, %v88
    %v101 = vpack.c.b16 %v91, %v90
    %v102 = vpack.c.b16 %v93, %v92
    %v103 = vpack.c.b16 %v95, %v94
    %v108 = vunpack.c.l.b16 %v56
    %v109 = vunpack.c.l.b16 %v57
    %v110 = vunpack.c.l.b16 %v58
    %v111 = vunpack.c.l.b16 %v59
    %v112 = vpack.c.b16 %v109, %v108
    %v113 = vpack.c.b16 %v111, %v110
    %vm116 = vcmask 261120
    %v118 = vsel %vm116, %v96, 0
    %v121 = vsel %vm116, %v97, 0
    %v124 = vsel %vm116, %v98, 0
    %v127 = vsel %vm116, %v99, 0
    %v130 = vsel %vm116, %v100, 0
    %v133 = vsel %vm116, %v101, 0
    %v136 = vsel %vm116, %v102, 0
    %v139 = vsel %vm116, %v103, 0
    %141 = vmatprep.subr.bf16.mxu0 0
    %142 = vmatpush1.bf16.msra.mxu0 %v112
    %143 = vmatprep.subr.bf16.mxu0 0
    %144 = vmatpush1.bf16.msra.mxu0 %v113
    %145 = vmatprep.subr.bf16.mxu0 0
    %146 = vmatpush1.bf16.msra.mxu0 0
    %147 = vmatprep.subr.bf16.mxu0 0
    %148 = vmatpush1.bf16.msra.mxu0 0
    %149 = vmatprep.subr.bf16.mxu0 0
    %150 = vmatpush1.bf16.msra.mxu0 0
    %151 = vmatprep.subr.bf16.mxu0 0
    %152 = vmatpush1.bf16.msra.mxu0 0
    %153 = vmatprep.subr.bf16.mxu0 0
    %154 = vmatpush1.bf16.msra.mxu0 0
    %155 = vmatprep.subr.bf16.mxu0 0
    %156 = vmatpush1.bf16.msra.mxu0 0
    %157 = vmatprep.subr.bf16.mxu0 0
    %158 = vmatpush1.bf16.msra.mxu0 0
    %159 = vmatprep.subr.bf16.mxu0 0
    %160 = vmatpush1.bf16.msra.mxu0 0
    %161 = vmatprep.subr.bf16.mxu0 0
    %162 = vmatpush1.bf16.msra.mxu0 0
    %163 = vmatprep.subr.bf16.mxu0 0
    %164 = vmatpush1.bf16.msra.mxu0 0
    %165 = vmatprep.subr.bf16.mxu0 0
    %166 = vmatpush1.bf16.msra.mxu0 0
    %167 = vmatprep.subr.bf16.mxu0 0
    %168 = vmatpush1.bf16.msra.mxu0 0
    %169 = vmatprep.subr.bf16.mxu0 0
    %170 = vmatpush1.bf16.msra.mxu0 0
    %171 = vmatprep.subr.bf16.mxu0 0
    %172 = vmatpush1.bf16.msra.mxu0 0
    %173 = vmatprep.mubr.bf16.mxu0 0
    %174 = vmatmul.mubr.bf16.gmra.mrb[0].mxu0 %v118
    %v175 = vpop.f32.mrb[0].mxu0
    %v176 = vadd.f32 %v63, %v175
    %v177 = vpop.f32.mrb[0].mxu0
    %v178 = vpop.f32.mrb[0].mxu0
    %v179 = vadd.f32 %v63, %v178
    %v180 = vpop.f32.mrb[0].mxu0
    %181 = vmatprep.mubr.bf16.mxu0 0
    %182 = vmatmul.mubr.bf16.gmra.mrb[0].mxu0 %v121
    %v183 = vpop.f32.mrb[0].mxu0
    %v184 = vadd.f32 %v63, %v183
    %v185 = vpop.f32.mrb[0].mxu0
    %v186 = vpop.f32.mrb[0].mxu0
    %v187 = vadd.f32 %v63, %v186
    %v188 = vpop.f32.mrb[0].mxu0
    %189 = vmatprep.mubr.bf16.mxu0 0
    %190 = vmatmul.mubr.bf16.gmra.mrb[0].mxu0 %v124
    %v191 = vpop.f32.mrb[0].mxu0
    %v192 = vadd.f32 %v63, %v191
    %v193 = vpop.f32.mrb[0].mxu0
    %v194 = vpop.f32.mrb[0].mxu0
    %v195 = vadd.f32 %v63, %v194
    %v196 = vpop.f32.mrb[0].mxu0
    %197 = vmatprep.mubr.bf16.mxu0 0
    %198 = vmatmul.mubr.bf16.gmra.mrb[0].mxu0 %v127
    %v199 = vpop.f32.mrb[0].mxu0
    %v200 = vadd.f32 %v63, %v199
    %v201 = vpop.f32.mrb[0].mxu0
    %v202 = vpop.f32.mrb[0].mxu0
    %v203 = vadd.f32 %v63, %v202
    %v204 = vpop.f32.mrb[0].mxu0
    %205 = vmatprep.mubr.bf16.mxu0 0
    %206 = vmatmul.mubr.bf16.gmra.mrb[0].mxu0 %v130
    %v207 = vpop.f32.mrb[0].mxu0
    %v208 = vadd.f32 %v63, %v207
    %v209 = vpop.f32.mrb[0].mxu0
    %v210 = vpop.f32.mrb[0].mxu0
    %v211 = vadd.f32 %v63, %v210
    %v212 = vpop.f32.mrb[0].mxu0
    %213 = vmatprep.mubr.bf16.mxu0 0
    %214 = vmatmul.mubr.bf16.gmra.mrb[0].mxu0 %v133
    %v215 = vpop.f32.mrb[0].mxu0
    %v216 = vadd.f32 %v63, %v215
    %v217 = vpop.f32.mrb[0].mxu0
    %v218 = vpop.f32.mrb[0].mxu0
    %v219 = vadd.f32 %v63, %v218
    %v220 = vpop.f32.mrb[0].mxu0
    %221 = vmatprep.mubr.bf16.mxu0 0
    %222 = vmatmul.mubr.bf16.gmra.mrb[0].mxu0 %v136
    %v223 = vpop.f32.mrb[0].mxu0
    %v224 = vadd.f32 %v63, %v223
    %v225 = vpop.f32.mrb[0].mxu0
    %v226 = vpop.f32.mrb[0].mxu0
    %v227 = vadd.f32 %v63, %v226
    %v228 = vpop.f32.mrb[0].mxu0
    %229 = vmatprep.mubr.bf16.mxu0 0
    %230 = vmatmul.mubr.bf16.gmra.mrb[0].mxu0 %v139
    %v231 = vpop.f32.mrb[0].mxu0
    %v232 = vadd.f32 %v63, %v231
    %v233 = vpop.f32.mrb[0].mxu0
    %v234 = vpop.f32.mrb[0].mxu0
    %v235 = vadd.f32 %v63, %v234
    %v236 = vpop.f32.mrb[0].mxu0
    %237 = vdwg.mxu0
    %v238 = vmax.f32 %v176, 0.0
    %v239 = vmax.f32 %v179, 0.0
    %v240 = vmax.f32 %v184, 0.0
    %v241 = vmax.f32 %v187, 0.0
    %v242 = vmax.f32 %v192, 0.0
    %v243 = vmax.f32 %v195, 0.0
    %v244 = vmax.f32 %v200, 0.0
    %v245 = vmax.f32 %v203, 0.0
    %v246 = vmax.f32 %v208, 0.0
    %v247 = vmax.f32 %v211, 0.0
    %v248 = vmax.f32 %v216, 0.0
    %v249 = vmax.f32 %v219, 0.0
    %v250 = vmax.f32 %v224, 0.0
    %v251 = vmax.f32 %v227, 0.0
    %v252 = vmax.f32 %v232, 0.0
    %v253 = vmax.f32 %v235, 0.0
    %v254 = vpack.c.bf16 %v239, %v238
    %v255 = vpack.c.bf16 %v241, %v240
    %v256 = vpack.c.bf16 %v243, %v242
    %v257 = vpack.c.bf16 %v245, %v244
    %v258 = vpack.c.bf16 %v247, %v246
    %v259 = vpack.c.bf16 %v249, %v248
    %v260 = vpack.c.bf16 %v251, %v250
    %v261 = vpack.c.bf16 %v253, %v252
    %v262 = vlaneseq
    %v263 = vshrl.u32 %v262, 7
    %v264 = vsub.s32 1, %v263
    %v265 = vrot.slane %v23, %v264
    %v274 = vunpack.c.l.b16 %v24
    %v275 = vunpack.c.l.b16 %v25
    %v276 = vunpack.c.l.b16 %v26
    %v277 = vunpack.c.l.b16 %v27
    %v278 = vunpack.c.l.b16 %v28
    %v279 = vunpack.c.l.b16 %v29
    %v280 = vunpack.c.l.b16 %v30
    %v281 = vunpack.c.l.b16 %v31
    %v282 = vpack.c.b16 %v275, %v274
    %v283 = vpack.c.b16 %v277, %v276
    %v284 = vpack.c.b16 %v279, %v278
    %v285 = vpack.c.b16 %v281, %v280
    %vm290 = vcmask 523264
    %v292 = vsel %vm290, %v254, 0
    %v295 = vsel %vm290, %v255, 0
    %v298 = vsel %vm290, %v256, 0
    %v301 = vsel %vm290, %v257, 0
    %v304 = vsel %vm290, %v258, 0
    %v307 = vsel %vm290, %v259, 0
    %v310 = vsel %vm290, %v260, 0
    %v313 = vsel %vm290, %v261, 0
    %315 = vmatprep.subr.bf16.mxu0 0
    %316 = vmatpush1.bf16.msra.mxu0 %v282
    %317 = vmatprep.subr.bf16.mxu0 0
    %318 = vmatpush1.bf16.msra.mxu0 %v283
    %319 = vmatprep.subr.bf16.mxu0 0
    %320 = vmatpush1.bf16.msra.mxu0 %v284
    %321 = vmatprep.subr.bf16.mxu0 0
    %322 = vmatpush1.bf16.msra.mxu0 %v285
    %323 = vmatprep.subr.bf16.mxu0 0
    %324 = vmatpush1.bf16.msra.mxu0 0
    %325 = vmatprep.subr.bf16.mxu0 0
    %326 = vmatpush1.bf16.msra.mxu0 0
    %327 = vmatprep.subr.bf16.mxu0 0
    %328 = vmatpush1.bf16.msra.mxu0 0
    %329 = vmatprep.subr.bf16.mxu0 0
    %330 = vmatpush1.bf16.msra.mxu0 0
    %331 = vmatprep.subr.bf16.mxu0 0
    %332 = vmatpush1.bf16.msra.mxu0 0
    %333 = vmatprep.subr.bf16.mxu0 0
    %334 = vmatpush1.bf16.msra.mxu0 0
    %335 = vmatprep.subr.bf16.mxu0 0
    %336 = vmatpush1.bf16.msra.mxu0 0
    %337 = vmatprep.subr.bf16.mxu0 0
    %338 = vmatpush1.bf16.msra.mxu0 0
    %339 = vmatprep.subr.bf16.mxu0 0
    %340 = vmatpush1.bf16.msra.mxu0 0
    %341 = vmatprep.subr.bf16.mxu0 0
    %342 = vmatpush1.bf16.msra.mxu0 0
    %343 = vmatprep.subr.bf16.mxu0 0
    %344 = vmatpush1.bf16.msra.mxu0 0
    %345 = vmatprep.subr.bf16.mxu0 0
    %346 = vmatpush1.bf16.msra.mxu0 0
    %347 = vmatprep.mubr.bf16.mxu0 0
    %348 = vmatmul.mubr.bf16.gmra.mrb[0].mxu0 %v292
    %v349 = vpop.f32.mrb[0].mxu0
    %v350 = vadd.f32 %v265, %v349
    %v351 = vpop.f32.mrb[0].mxu0
    %v352 = vpop.f32.mrb[0].mxu0
    %v353 = vadd.f32 %v265, %v352
    %v354 = vpop.f32.mrb[0].mxu0
    %355 = vmatprep.mubr.bf16.mxu0 0
    %356 = vmatmul.mubr.bf16.gmra.mrb[0].mxu0 %v295
    %v357 = vpop.f32.mrb[0].mxu0
    %v358 = vadd.f32 %v265, %v357
    %v359 = vpop.f32.mrb[0].mxu0
    %v360 = vpop.f32.mrb[0].mxu0
    %v361 = vadd.f32 %v265, %v360
    %v362 = vpop.f32.mrb[0].mxu0
    %363 = vmatprep.mubr.bf16.mxu0 0
    %364 = vmatmul.mubr.bf16.gmra.mrb[0].mxu0 %v298
    %v365 = vpop.f32.mrb[0].mxu0
    %v366 = vadd.f32 %v265, %v365
    %v367 = vpop.f32.mrb[0].mxu0
    %v368 = vpop.f32.mrb[0].mxu0
    %v369 = vadd.f32 %v265, %v368
    %v370 = vpop.f32.mrb[0].mxu0
    %371 = vmatprep.mubr.bf16.mxu0 0
    %372 = vmatmul.mubr.bf16.gmra.mrb[0].mxu0 %v301
    %v373 = vpop.f32.mrb[0].mxu0
    %v374 = vadd.f32 %v265, %v373
    %v375 = vpop.f32.mrb[0].mxu0
    %v376 = vpop.f32.mrb[0].mxu0
    %v377 = vadd.f32 %v265, %v376
    %v378 = vpop.f32.mrb[0].mxu0
    %379 = vmatprep.mubr.bf16.mxu0 0
    %380 = vmatmul.mubr.bf16.gmra.mrb[0].mxu0 %v304
    %v381 = vpop.f32.mrb[0].mxu0
    %v382 = vadd.f32 %v265, %v381
    %v383 = vpop.f32.mrb[0].mxu0
    %v384 = vpop.f32.mrb[0].mxu0
    %v385 = vadd.f32 %v265, %v384
    %v386 = vpop.f32.mrb[0].mxu0
    %387 = vmatprep.mubr.bf16.mxu0 0
    %388 = vmatmul.mubr.bf16.gmra.mrb[0].mxu0 %v307
    %v389 = vpop.f32.mrb[0].mxu0
    %v390 = vadd.f32 %v265, %v389
    %v391 = vpop.f32.mrb[0].mxu0
    %v392 = vpop.f32.mrb[0].mxu0
    %v393 = vadd.f32 %v265, %v392
    %v394 = vpop.f32.mrb[0].mxu0
    %395 = vmatprep.mubr.bf16.mxu0 0
    %396 = vmatmul.mubr.bf16.gmra.mrb[0].mxu0 %v310
    %v397 = vpop.f32.mrb[0].mxu0
    %v398 = vadd.f32 %v265, %v397
    %v399 = vpop.f32.mrb[0].mxu0
    %v400 = vpop.f32.mrb[0].mxu0
    %v401 = vadd.f32 %v265, %v400
    %v402 = vpop.f32.mrb[0].mxu0
    %403 = vmatprep.mubr.bf16.mxu0 0
    %404 = vmatmul.mubr.bf16.gmra.mrb[0].mxu0 %v313
    %v405 = vpop.f32.mrb[0].mxu0
    %v406 = vadd.f32 %v265, %v405
    %v407 = vpop.f32.mrb[0].mxu0
    %v408 = vpop.f32.mrb[0].mxu0
    %v409 = vadd.f32 %v265, %v408
    %v410 = vpop.f32.mrb[0].mxu0
    %411 = vdwg.mxu0
    %v412 = vmax.f32 %v350, 0.0
    %v413 = vmax.f32 %v353, 0.0
    %v414 = vmax.f32 %v358, 0.0
    %v415 = vmax.f32 %v361, 0.0
    %v416 = vmax.f32 %v366, 0.0
    %v417 = vmax.f32 %v369, 0.0
    %v418 = vmax.f32 %v374, 0.0
    %v419 = vmax.f32 %v377, 0.0
    %v420 = vmax.f32 %v382, 0.0
    %v421 = vmax.f32 %v385, 0.0
    %v422 = vmax.f32 %v390, 0.0
    %v423 = vmax.f32 %v393, 0.0
    %v424 = vmax.f32 %v398, 0.0
    %v425 = vmax.f32 %v401, 0.0
    %v426 = vmax.f32 %v406, 0.0
    %v427 = vmax.f32 %v409, 0.0
    %v428 = vpack.c.bf16 %v413, %v412
    %v429 = vpack.c.bf16 %v415, %v414
    %v430 = vpack.c.bf16 %v417, %v416
    %v431 = vpack.c.bf16 %v419, %v418
    %v432 = vpack.c.bf16 %v421, %v420
    %v433 = vpack.c.bf16 %v423, %v422
    %v434 = vpack.c.bf16 %v425, %v424
    %v435 = vpack.c.bf16 %v427, %v426
    %v436 = vlaneseq
    %v437 = vshrl.u32 %v436, 7
    %v438 = vsub.s32 2, %v437
    %v439 = vrot.slane %v23, %v438
    %v448 = vunpack.c.l.b16 %v32
    %v449 = vunpack.c.l.b16 %v33
    %v450 = vunpack.c.l.b16 %v34
    %v451 = vunpack.c.l.b16 %v35
    %v452 = vunpack.c.l.b16 %v36
    %v453 = vunpack.c.l.b16 %v37
    %v454 = vunpack.c.l.b16 %v38
    %v455 = vunpack.c.l.b16 %v39
    %v456 = vpack.c.b16 %v449, %v448
    %v457 = vpack.c.b16 %v451, %v450
    %v458 = vpack.c.b16 %v453, %v452
    %v459 = vpack.c.b16 %v455, %v454
    %v465 = vsel %vm290, %v428, 0
    %v468 = vsel %vm290, %v429, 0
    %v471 = vsel %vm290, %v430, 0
    %v474 = vsel %vm290, %v431, 0
    %v477 = vsel %vm290, %v432, 0
    %v480 = vsel %vm290, %v433, 0
    %v483 = vsel %vm290, %v434, 0
    %v486 = vsel %vm290, %v435, 0
    %488 = vmatprep.subr.bf16.mxu0 0
    %489 = vmatpush1.bf16.msra.mxu0 %v456
    %490 = vmatprep.subr.bf16.mxu0 0
    %491 = vmatpush1.bf16.msra.mxu0 %v457
    %492 = vmatprep.subr.bf16.mxu0 0
    %493 = vmatpush1.bf16.msra.mxu0 %v458
    %494 = vmatprep.subr.bf16.mxu0 0
    %495 = vmatpush1.bf16.msra.mxu0 %v459
    %496 = vmatprep.subr.bf16.mxu0 0
    %497 = vmatpush1.bf16.msra.mxu0 0
    %498 = vmatprep.subr.bf16.mxu0 0
    %499 = vmatpush1.bf16.msra.mxu0 0
    %500 = vmatprep.subr.bf16.mxu0 0
    %501 = vmatpush1.bf16.msra.mxu0 0
    %502 = vmatprep.subr.bf16.mxu0 0
    %503 = vmatpush1.bf16.msra.mxu0 0
    %504 = vmatprep.subr.bf16.mxu0 0
    %505 = vmatpush1.bf16.msra.mxu0 0
    %506 = vmatprep.subr.bf16.mxu0 0
    %507 = vmatpush1.bf16.msra.mxu0 0
    %508 = vmatprep.subr.bf16.mxu0 0
    %509 = vmatpush1.bf16.msra.mxu0 0
    %510 = vmatprep.subr.bf16.mxu0 0
    %511 = vmatpush1.bf16.msra.mxu0 0
    %512 = vmatprep.subr.bf16.mxu0 0
    %513 = vmatpush1.bf16.msra.mxu0 0
    %514 = vmatprep.subr.bf16.mxu0 0
    %515 = vmatpush1.bf16.msra.mxu0 0
    %516 = vmatprep.subr.bf16.mxu0 0
    %517 = vmatpush1.bf16.msra.mxu0 0
    %518 = vmatprep.subr.bf16.mxu0 0
    %519 = vmatpush1.bf16.msra.mxu0 0
    %520 = vmatprep.mubr.bf16.mxu0 0
    %521 = vmatmul.mubr.bf16.gmra.mrb[0].mxu0 %v465
    %v522 = vpop.f32.mrb[0].mxu0
    %v523 = vadd.f32 %v439, %v522
    %v524 = vpop.f32.mrb[0].mxu0
    %v525 = vpop.f32.mrb[0].mxu0
    %v526 = vadd.f32 %v439, %v525
    %v527 = vpop.f32.mrb[0].mxu0
    %528 = vmatprep.mubr.bf16.mxu0 0
    %529 = vmatmul.mubr.bf16.gmra.mrb[0].mxu0 %v468
    %v530 = vpop.f32.mrb[0].mxu0
    %v531 = vadd.f32 %v439, %v530
    %v532 = vpop.f32.mrb[0].mxu0
    %v533 = vpop.f32.mrb[0].mxu0
    %v534 = vadd.f32 %v439, %v533
    %v535 = vpop.f32.mrb[0].mxu0
    %536 = vmatprep.mubr.bf16.mxu0 0
    %537 = vmatmul.mubr.bf16.gmra.mrb[0].mxu0 %v471
    %v538 = vpop.f32.mrb[0].mxu0
    %v539 = vadd.f32 %v439, %v538
    %v540 = vpop.f32.mrb[0].mxu0
    %v541 = vpop.f32.mrb[0].mxu0
    %v542 = vadd.f32 %v439, %v541
    %v543 = vpop.f32.mrb[0].mxu0
    %544 = vmatprep.mubr.bf16.mxu0 0
    %545 = vmatmul.mubr.bf16.gmra.mrb[0].mxu0 %v474
    %v546 = vpop.f32.mrb[0].mxu0
    %v547 = vadd.f32 %v439, %v546
    %v548 = vpop.f32.mrb[0].mxu0
    %v549 = vpop.f32.mrb[0].mxu0
    %v550 = vadd.f32 %v439, %v549
    %v551 = vpop.f32.mrb[0].mxu0
    %552 = vmatprep.mubr.bf16.mxu0 0
    %553 = vmatmul.mubr.bf16.gmra.mrb[0].mxu0 %v477
    %v554 = vpop.f32.mrb[0].mxu0
    %v555 = vadd.f32 %v439, %v554
    %v556 = vpop.f32.mrb[0].mxu0
    %v557 = vpop.f32.mrb[0].mxu0
    %v558 = vadd.f32 %v439, %v557
    %v559 = vpop.f32.mrb[0].mxu0
    %560 = vmatprep.mubr.bf16.mxu0 0
    %561 = vmatmul.mubr.bf16.gmra.mrb[0].mxu0 %v480
    %v562 = vpop.f32.mrb[0].mxu0
    %v563 = vadd.f32 %v439, %v562
    %v564 = vpop.f32.mrb[0].mxu0
    %v565 = vpop.f32.mrb[0].mxu0
    %v566 = vadd.f32 %v439, %v565
    %v567 = vpop.f32.mrb[0].mxu0
    %568 = vmatprep.mubr.bf16.mxu0 0
    %569 = vmatmul.mubr.bf16.gmra.mrb[0].mxu0 %v483
    %v570 = vpop.f32.mrb[0].mxu0
    %v571 = vadd.f32 %v439, %v570
    %v572 = vpop.f32.mrb[0].mxu0
    %v573 = vpop.f32.mrb[0].mxu0
    %v574 = vadd.f32 %v439, %v573
    %v575 = vpop.f32.mrb[0].mxu0
    %576 = vmatprep.mubr.bf16.mxu0 0
    %577 = vmatmul.mubr.bf16.gmra.mrb[0].mxu0 %v486
    %v578 = vpop.f32.mrb[0].mxu0
    %v579 = vadd.f32 %v439, %v578
    %v580 = vpop.f32.mrb[0].mxu0
    %v581 = vpop.f32.mrb[0].mxu0
    %v582 = vadd.f32 %v439, %v581
    %v583 = vpop.f32.mrb[0].mxu0
    %584 = vdwg.mxu0
    %v585 = vmax.f32 %v523, 0.0
    %v586 = vmax.f32 %v526, 0.0
    %v587 = vmax.f32 %v531, 0.0
    %v588 = vmax.f32 %v534, 0.0
    %v589 = vmax.f32 %v539, 0.0
    %v590 = vmax.f32 %v542, 0.0
    %v591 = vmax.f32 %v547, 0.0
    %v592 = vmax.f32 %v550, 0.0
    %v593 = vmax.f32 %v555, 0.0
    %v594 = vmax.f32 %v558, 0.0
    %v595 = vmax.f32 %v563, 0.0
    %v596 = vmax.f32 %v566, 0.0
    %v597 = vmax.f32 %v571, 0.0
    %v598 = vmax.f32 %v574, 0.0
    %v599 = vmax.f32 %v579, 0.0
    %v600 = vmax.f32 %v582, 0.0
    %v601 = vlaneseq
    %v602 = vshrl.u32 %v601, 7
    %v603 = vsub.s32 3, %v602
    %v604 = vrot.slane %v23, %v603
    %v605 = vmul.f32 %v585, %v604
    %v606 = vmul.f32 %v586, %v604
    %v607 = vmul.f32 %v587, %v604
    %v608 = vmul.f32 %v588, %v604
    %v609 = vmul.f32 %v589, %v604
    %v610 = vmul.f32 %v590, %v604
    %v611 = vmul.f32 %v591, %v604
    %v612 = vmul.f32 %v592, %v604
    %v613 = vmul.f32 %v593, %v604
    %v614 = vmul.f32 %v594, %v604
    %v615 = vmul.f32 %v595, %v604
    %v616 = vmul.f32 %v596, %v604
    %v617 = vmul.f32 %v597, %v604
    %v618 = vmul.f32 %v598, %v604
    %v619 = vmul.f32 %v599, %v604
    %v620 = vmul.f32 %v600, %v604
    %v621 = vsel %vm290, %v605, 0.0
    %622 = vadd.xlane.f32.xlu0 %v621
    %v623 = vpop.xlane.xlu0 %622
    %v624 = vsel %vm290, %v606, 0.0
    %625 = vadd.xlane.f32.xlu0 %v624
    %v626 = vpop.xlane.xlu0 %625
    %v627 = vsel %vm290, %v607, 0.0
    %628 = vadd.xlane.f32.xlu0 %v627
    %v629 = vpop.xlane.xlu0 %628
    %v630 = vsel %vm290, %v608, 0.0
    %631 = vadd.xlane.f32.xlu0 %v630
    %v632 = vpop.xlane.xlu0 %631
    %v633 = vsel %vm290, %v609, 0.0
    %634 = vadd.xlane.f32.xlu0 %v633
    %v635 = vpop.xlane.xlu0 %634
    %v636 = vsel %vm290, %v610, 0.0
    %637 = vadd.xlane.f32.xlu0 %v636
    %v638 = vpop.xlane.xlu0 %637
    %v639 = vsel %vm290, %v611, 0.0
    %640 = vadd.xlane.f32.xlu0 %v639
    %v641 = vpop.xlane.xlu0 %640
    %v642 = vsel %vm290, %v612, 0.0
    %643 = vadd.xlane.f32.xlu0 %v642
    %v644 = vpop.xlane.xlu0 %643
    %v645 = vsel %vm290, %v613, 0.0
    %646 = vadd.xlane.f32.xlu0 %v645
    %v647 = vpop.xlane.xlu0 %646
    %v648 = vsel %vm290, %v614, 0.0
    %649 = vadd.xlane.f32.xlu0 %v648
    %v650 = vpop.xlane.xlu0 %649
    %v651 = vsel %vm290, %v615, 0.0
    %652 = vadd.xlane.f32.xlu0 %v651
    %v653 = vpop.xlane.xlu0 %652
    %v654 = vsel %vm290, %v616, 0.0
    %655 = vadd.xlane.f32.xlu0 %v654
    %v656 = vpop.xlane.xlu0 %655
    %v657 = vsel %vm290, %v617, 0.0
    %658 = vadd.xlane.f32.xlu0 %v657
    %v659 = vpop.xlane.xlu0 %658
    %v660 = vsel %vm290, %v618, 0.0
    %661 = vadd.xlane.f32.xlu0 %v660
    %v662 = vpop.xlane.xlu0 %661
    %v663 = vsel %vm290, %v619, 0.0
    %664 = vadd.xlane.f32.xlu0 %v663
    %v665 = vpop.xlane.xlu0 %664
    %v666 = vsel %vm290, %v620, 0.0
    %667 = vadd.xlane.f32.xlu0 %v666
    %v668 = vpop.xlane.xlu0 %667
    %s669 = sld [smem:[#allocation2]]
    %v670 = vstv %s669
    %v671 = vadd.f32 %v623, %v670
    %v672 = vadd.f32 %v626, %v670
    %v673 = vadd.f32 %v629, %v670
    %v674 = vadd.f32 %v632, %v670
    %v675 = vadd.f32 %v635, %v670
    %v676 = vadd.f32 %v638, %v670
    %v677 = vadd.f32 %v641, %v670
    %v678 = vadd.f32 %v644, %v670
    %v679 = vadd.f32 %v647, %v670
    %v680 = vadd.f32 %v650, %v670
    %v681 = vadd.f32 %v653, %v670
    %v682 = vadd.f32 %v656, %v670
    %v683 = vadd.f32 %v659, %v670
    %v684 = vadd.f32 %v662, %v670
    %v685 = vadd.f32 %v665, %v670
    %v686 = vadd.f32 %v668, %v670
    %v703 = vlaneseq
    %v704 = vand.u32 %v703, 127
    %v705 = vlaneseq
    %v706 = vshrl.u32 %v705, 7
    %v707 = vsub.s32 %v704, %v706
    %v708 = vrot.slane %v671, %v707
    %v709 = vadd.s32 %v704, 4294967288
    %v710 = vlaneseq
    %v711 = vshrl.u32 %v710, 7
    %v712 = vsub.s32 %v709, %v711
    %v713 = vrot.slane %v672, %v712
    %vm714 = vcmask 130112
    %v715 = vsel %vm714, %v713, %v708
    %v716 = vadd.s32 %v704, 4294967280
    %v717 = vlaneseq
    %v718 = vshrl.u32 %v717, 7
    %v719 = vsub.s32 %v716, %v718
    %v720 = vrot.slane %v673, %v719
    %vm721 = vcmask 195712
    %v722 = vsel %vm721, %v720, %v715
    %v723 = vadd.s32 %v704, 4294967272
    %v724 = vlaneseq
    %v725 = vshrl.u32 %v724, 7
    %v726 = vsub.s32 %v723, %v725
    %v727 = vrot.slane %v674, %v726
    %vm728 = vcmask 261312
    %v729 = vsel %vm728, %v727, %v722
    %v730 = vadd.s32 %v704, 4294967264
    %v731 = vlaneseq
    %v732 = vshrl.u32 %v731, 7
    %v733 = vsub.s32 %v730, %v732
    %v734 = vrot.slane %v675, %v733
    %vm735 = vcmask 326912
    %v736 = vsel %vm735, %v734, %v729
    %v737 = vadd.s32 %v704, 4294967256
    %v738 = vlaneseq
    %v739 = vshrl.u32 %v738, 7
    %v740 = vsub.s32 %v737, %v739
    %v741 = vrot.slane %v676, %v740
    %vm742 = vcmask 392512
    %v743 = vsel %vm742, %v741, %v736
    %v744 = vadd.s32 %v704, 4294967248
    %v745 = vlaneseq
    %v746 = vshrl.u32 %v745, 7
    %v747 = vsub.s32 %v744, %v746
    %v748 = vrot.slane %v677, %v747
    %vm749 = vcmask 458112
    %v750 = vsel %vm749, %v748, %v743
    %v751 = vadd.s32 %v704, 4294967240
    %v752 = vlaneseq
    %v753 = vshrl.u32 %v752, 7
    %v754 = vsub.s32 %v751, %v753
    %v755 = vrot.slane %v678, %v754
    %vm756 = vcmask 523712
    %v757 = vsel %vm756, %v755, %v750
    %v758 = vadd.s32 %v704, 4294967232
    %v759 = vlaneseq
    %v760 = vshrl.u32 %v759, 7
    %v761 = vsub.s32 %v758, %v760
    %v762 = vrot.slane %v679, %v761
    %vm763 = vcmask 589312
    %v764 = vsel %vm763, %v762, %v757
    %v765 = vadd.s32 %v704, 4294967224
    %v766 = vlaneseq
    %v767 = vshrl.u32 %v766, 7
    %v768 = vsub.s32 %v765, %v767
    %v769 = vrot.slane %v680, %v768
    %vm770 = vcmask 654912
    %v771 = vsel %vm770, %v769, %v764
    %v772 = vadd.s32 %v704, 4294967216
    %v773 = vlaneseq
    %v774 = vshrl.u32 %v773, 7
    %v775 = vsub.s32 %v772, %v774
    %v776 = vrot.slane %v681, %v775
    %vm777 = vcmask 720512
    %v778 = vsel %vm777, %v776, %v771
    %v779 = vadd.s32 %v704, 4294967208
    %v780 = vlaneseq
    %v781 = vshrl.u32 %v780, 7
    %v782 = vsub.s32 %v779, %v781
    %v783 = vrot.slane %v682, %v782
    %vm784 = vcmask 786112
    %v785 = vsel %vm784, %v783, %v778
    %v786 = vadd.s32 %v704, 4294967200
    %v787 = vlaneseq
    %v788 = vshrl.u32 %v787, 7
    %v789 = vsub.s32 %v786, %v788
    %v790 = vrot.slane %v683, %v789
    %vm791 = vcmask 851712
    %v792 = vsel %vm791, %v790, %v785
    %v793 = vadd.s32 %v704, 4294967192
    %v794 = vlaneseq
    %v795 = vshrl.u32 %v794, 7
    %v796 = vsub.s32 %v793, %v795
    %v797 = vrot.slane %v684, %v796
    %vm798 = vcmask 917312
    %v799 = vsel %vm798, %v797, %v792
    %v800 = vadd.s32 %v704, 4294967184
    %v801 = vlaneseq
    %v802 = vshrl.u32 %v801, 7
    %v803 = vsub.s32 %v800, %v802
    %v804 = vrot.slane %v685, %v803
    %vm805 = vcmask 982912
    %v806 = vsel %vm805, %v804, %v799
    %v807 = vadd.s32 %v704, 4294967176
    %v808 = vlaneseq
    %v809 = vshrl.u32 %v808, 7
    %v810 = vsub.s32 %v807, %v809
    %v811 = vrot.slane %v686, %v810
    %vm812 = vcmask 1048512
    %v813 = vsel %vm812, %v811, %v806
    %815 = vst [vmem:[#allocation3] sm:$0x1] %v813
    // Predicated region
    $region22: #{tpu_custom_call.1} parent=1 // pred_check
      _
    $region23: #{tpu_custom_call.1} parent=1 // pred_check_branch
      %817 = sbr.rel (0) target = $region25
    $region24: #{tpu_custom_call.1} parent=1 // pred_region
      %s819 = ssub.s32 16, 16
      %820 = vsyncadd [#allocation4], %s819
      %s822 = sshll.u32 [#allocation3], 4
      %s823 = int_to_ptr.vmem [resolvable:$true] %s822
      %825 = dma.vmem_to_hbm [thread:$0]  %s823, 16, %s5, [#allocation4]
    $region25: #{tpu_custom_call.1} parent=1 // pred_fallthru
      _
    // Predicated region
    $region26: #{tpu_custom_call.1} parent=1 // pred_check
      _
    $region27: #{tpu_custom_call.1} parent=1 // pred_check_branch
      %827 = sbr.rel (0) target = $region29
    $region28: #{tpu_custom_call.1} parent=1 // pred_region
      %828 = dma.done [#allocation4], 16
    $region29: #{tpu_custom_call.1} parent=1 // pred_fallthru
      _
    %829 = vsyncpa [#allocation4], 1

</llo_original>
